<compile_context>
chip_gen: v5e
topology: v5e:2x2
jax: 0.10.0
libtpu: 0.0.40
codegen_flags: <defaults>
</compile_context>

<pallas_src>
import functools

import jax
import jax.numpy as jnp
from jax.experimental import pallas as pl
from jax.experimental.pallas import tpu as pltpu

_LANE_CANDS = (4096, 2048, 1024, 512, 256, 128)   # lane-dense widths, big first
_TARGET_BLOCK_ELEMS = 512 * 1024                  # ~2 MiB per streamed f32 block
_SINGLE_BLOCK_MAX_ELEMS = 2 * 1024 * 1024         # whole-tensor-in-VMEM path (8 MiB f32)
_SMALL_FLAT_MAX_ELEMS = 65536                     # (1, n) slab cap for ragged tiny tensors
_FALLBACK_W = 256                                 # padded-fallback geometry
_FALLBACK_TR = 256
_VMEM_LIMIT = 32 * 1024 * 1024


# --------------------------------------------------------------------------
# geometry helpers (all static / trace-time Python)
# --------------------------------------------------------------------------
def _factor_slab(n):
    """Return (rows, W) with rows * W == n and W a multiple of 128.

    Prefers large W and rows that are a multiple of 8 (clean (8,128) tiling).
    Returns None if no candidate width divides n.
    """
    best = None
    for w in _LANE_CANDS:
        if n % w == 0:
            rows = n // w
            if rows % 8 == 0:
                return rows, w
            if best is None:
                best = (rows, w)
    return best


def _pick_tile_rows(rows, w):
    """Largest TR (multiple of 8, divisor of rows) with TR*W ~ target block."""
    target = max(8, (_TARGET_BLOCK_ELEMS // w) // 8 * 8)
    tr = min(rows, target)
    tr -= tr % 8
    while tr > 8 and rows % tr != 0:
        tr -= 8
    if tr < 8 or rows % tr != 0:
        return None
    return tr


# --------------------------------------------------------------------------
# kernels
# --------------------------------------------------------------------------
def _whole_kernel(x_ref, o_ref, *, inv_n):
    """Whole tensor in one VMEM block: mean + broadcast add in one shot."""
    x = x_ref[...].astype(jnp.float32)
    mean = jnp.sum(x) * inv_n                         # scalar f32
    o_ref[...] = (x + mean).astype(o_ref.dtype)


def _fused_tiled_kernel(x_ref, o_ref, acc_ref, mean_ref, *, inv_n):
    """grid = (2, n_tiles): pass 0 = sum/mean, pass 1 = broadcast add."""
    p = pl.program_id(0)        # pass index: 0 = reduce, 1 = add
    t = pl.program_id(1)        # tile index
    nt = pl.num_programs(1)

    @pl.when(jnp.logical_and(p == 0, t == 0))
    def _():
        acc_ref[...] = jnp.zeros_like(acc_ref)

    @pl.when(p == 0)
    def _():
        xb = x_ref[...].astype(jnp.float32)           # (TR, W)
        # per-lane partial sums (VPU); the single cross-lane reduce (XLU)
        # happens exactly once at the end of pass 0.
        acc_ref[...] += jnp.sum(xb, axis=0, keepdims=True)

        @pl.when(t == nt - 1)
        def _():
            mean_ref[...] = jnp.sum(acc_ref[...], keepdims=True) * inv_n

    @pl.when(p == 1)
    def _():
        xb = x_ref[...].astype(jnp.float32)
        o_ref[...] = (xb + mean_ref[...]).astype(o_ref.dtype)


# --------------------------------------------------------------------------
# pallas_call wrappers
# --------------------------------------------------------------------------
def _call_whole(x2d, n):
    rows, w = x2d.shape
    return pl.pallas_call(
        functools.partial(_whole_kernel, inv_n=float(1.0 / n)),
        out_shape=jax.ShapeDtypeStruct((rows, w), x2d.dtype),
        in_specs=[pl.BlockSpec(memory_space=pltpu.MemorySpace.VMEM)],
        out_specs=pl.BlockSpec(memory_space=pltpu.MemorySpace.VMEM),
        compiler_params=pltpu.CompilerParams(vmem_limit_bytes=_VMEM_LIMIT),
    )(x2d)


def _call_tiled(x2d, n, tile_rows):
    rows, w = x2d.shape
    n_tiles = rows // tile_rows
    return pl.pallas_call(
        functools.partial(_fused_tiled_kernel, inv_n=float(1.0 / n)),
        out_shape=jax.ShapeDtypeStruct((rows, w), x2d.dtype),
        grid_spec=pltpu.PrefetchScalarGridSpec(
            num_scalar_prefetch=0,
            grid=(2, n_tiles),
            in_specs=[pl.BlockSpec((tile_rows, w), lambda p, t: (t, 0))],
            # output block pinned to 0 during pass 0 -> no garbage writeback;
            # streamed out once per tile during pass 1.
            out_specs=pl.BlockSpec((tile_rows, w), lambda p, t: (t * p, 0)),
            scratch_shapes=[
                pltpu.VMEM((1, w), jnp.float32),    # per-lane partial sums
                pltpu.VMEM((1, 1), jnp.float32),    # finalized mean
            ],
        ),
        compiler_params=pltpu.CompilerParams(
            dimension_semantics=("arbitrary", "arbitrary"),
            vmem_limit_bytes=_VMEM_LIMIT,
        ),
    )(x2d)


def _add_mean_single(x):
    """out = x + mean(x) for a single tensor of any rank/size."""
    n = x.size
    if n == 0:                                    # empty tensor: nothing to do
        return x
    shape = x.shape
    flat = x.reshape(-1)

    fact = _factor_slab(n)

    # ---- path 1: whole tensor fits in a single VMEM block ----------------
    if n <= _SINGLE_BLOCK_MAX_ELEMS and (fact is not None
                                         or n <= _SMALL_FLAT_MAX_ELEMS):
        rows, w = fact if fact is not None else (1, n)
        out2d = _call_whole(flat.reshape(rows, w), n)
        return out2d.reshape(shape)

    # ---- path 2: tiled fused two-pass kernel, no padding ------------------
    if fact is not None and fact[0] % 8 == 0:
        rows, w = fact
        tr = _pick_tile_rows(rows, w)
        if tr is not None:
            out2d = _call_tiled(flat.reshape(rows, w), n, tr)
            return out2d.reshape(shape)

    # ---- path 3: rare ragged fallback — zero-pad, then slice --------------
    blk = _FALLBACK_TR * _FALLBACK_W
    n_pad = pl.cdiv(n, blk) * blk
    flat_p = jnp.pad(flat, (0, n_pad - n))        # zeros don't affect the sum
    out2d = _call_tiled(flat_p.reshape(n_pad // _FALLBACK_W, _FALLBACK_W),
                        n, _FALLBACK_TR)
    return out2d.reshape(-1)[:n].reshape(shape)


_add_mean_jit = jax.jit(_add_mean_single)


def pt_module_forward(inputs):
    """Pallas equivalent of PtModule.forward: list-in, list-out."""
    return [_add_mean_jit(t) for t in inputs]


# --------------------------------------------------------------------------
if __name__ == "__main__":
    key = jax.random.PRNGKey(0)
    k1, k2, k3, k4, k5 = jax.random.split(key, 5)

    inputs = [
        jax.random.normal(k1, (2, 4, 16, 16), dtype=jnp.float32),     # whole-block path
        jax.random.normal(k2, (2, 8, 32), dtype=jnp.float32),         # whole-block, 1-row slab
        jax.random.normal(k3, (8,), dtype=jnp.float32),               # tiny 1-D
        jax.random.normal(k4, (4, 16, 256, 256), dtype=jnp.float32),  # fused tiled path
        jax.random.normal(k5, (255, 1001), dtype=jnp.float32),        # padded fallback path
    ]

    outs = pt_module_forward(inputs)
    for o in outs:
        jax.block_until_ready(o)

    # correctness check against plain-JAX reference
    for x, o in zip(inputs, outs):
        ref = x + jnp.mean(x)
        assert o.shape == x.shape and o.dtype == x.dtype
        assert jnp.allclose(o, ref, atol=1e-5, rtol=1e-5), \
            float(jnp.max(jnp.abs(o - ref)))

    print("KERNEL_OK")
</pallas_src>

<mosaic_0001>
module attributes {stable_mosaic.version = 11 : i64} {
  func.func @_whole_kernel(%arg0: memref<8x256xf32, #tpu.memory_space<vmem>>, %arg1: memref<8x256xf32, #tpu.memory_space<vmem>>) attributes {dimension_semantics = [], scalar_prefetch = 0 : i64, scratch_operands = 0 : i64, tpu.core_type = #tpu.core_type<tc>} {
    %c0 = arith.constant 0 : index
    %c0_0 = arith.constant 0 : index
    %0 = vector.load %arg0[%c0, %c0_0] : memref<8x256xf32, #tpu.memory_space<vmem>>, vector<8x256xf32>
    %1 = vector.shape_cast %0 : vector<8x256xf32> to vector<1x8x256xf32>
    %cst = arith.constant dense<0.000000e+00> : vector<1xf32>
    %2 = vector.multi_reduction <add>, %1, %cst [1, 2] : vector<1x8x256xf32> to vector<1xf32>
    %3 = vector.shape_cast %2 : vector<1xf32> to vector<1x1x1xf32>
    %4 = vector.extract %3[0, 0, 0] : f32 from vector<1x1x1xf32>
    %cst_1 = arith.constant 4.8828125E-4 : f32
    %5 = arith.mulf %4, %cst_1 : f32
    %6 = vector.broadcast %5 : f32 to vector<8x256xf32>
    %7 = arith.addf %0, %6 : vector<8x256xf32>
    %c0_2 = arith.constant 0 : index
    %c0_3 = arith.constant 0 : index
    %8 = vector.load %arg1[%c0_2, %c0_3] : memref<8x256xf32, #tpu.memory_space<vmem>>, vector<8x256xf32>
    tpu.vector_store %arg1[%c0_2, %c0_3], %7 {strides = array<i32>} : memref<8x256xf32, #tpu.memory_space<vmem>>, vector<8x256xf32>,
    return
  }
}

</mosaic_0001>

<llo_original>
// kernel: _add_mean_single.1
$region0: #{_add_mean_single.1}
  #allocation0 [shape = 'u32[]', space=smem, size = 0x4, offset = 0x4, fixed_abs, tag = 'smem constant byte address 0x4 - core index']
  #allocation1 [shape = 'u32[72,128]{1,0:T(1,128)}', space=vmem, size = 0x9000, scoped, tag = 'internal scratch']
  %s0 = inlined_call_operand.vmem [shape: f32[8,256], index: 0, kind: input, shape index: {}]
  %s1 = inlined_call_operand.vmem [shape: f32[8,256], index: 1, kind: output, shape index: {}]
  %s2 = sld [smem:[#allocation0]]
  $region14: #{_add_mean_single.1} parent=0
    _
  %s4 = ssub.s32 1, %s2
  %s5 = scalar_select 0, %s4, %s2
  // Predicated region
  $region2: #{_add_mean_single.1} parent=0 // pred_check
    _
  $region3: #{_add_mean_single.1} parent=0 // pred_check_branch
    %7 = sbr.rel (0) target = $region5
  $region4: #{_add_mean_single.1} parent=0 // pred_region
    _
  $region5: #{_add_mean_single.1} parent=0 // pred_fallthru
    _
  %v8 = vld [vmem:[%s0] sm:$0xff]
  %v9 = vld [vmem:[%s0 + $0x8] sm:$0xff]
  %v10 = vadd.f32 %v8, %v9
  %11 = vadd.xlane.f32.xlu0 %v10
  %v12 = vpop.xlane.xlu0 %11
  %v13 = vrot.slane %v12, 4
  %v14 = vadd.f32 %v12, %v13
  %v15 = vrot.slane %v14, 2
  %v16 = vadd.f32 %v14, %v15
  %v17 = vrot.slane %v16, 1
  %v18 = vadd.f32 %v16, %v17
  %s19 = vtos %v18
  %s20 = smul.f32 %s19, 0.00048828125
  %v21 = vstv %s20
  %v22 = vadd.f32 %v8, %v21
  %v23 = vadd.f32 %v9, %v21
  %24 = vst [vmem:[%s1] sm:$0xff] %v22
  %25 = vst [vmem:[%s1 + $0x8] sm:$0xff] %v23
  // Predicated region
  $region6: #{_add_mean_single.1} parent=0 // pred_check
    _
  $region7: #{_add_mean_single.1} parent=0 // pred_check_branch
    %27 = sbr.rel (0) target = $region9
  $region8: #{_add_mean_single.1} parent=0 // pred_region
    _
  $region9: #{_add_mean_single.1} parent=0 // pred_fallthru
    _
  // Predicated region
  $region10: #{_add_mean_single.1} parent=0 // pred_check
    _
  $region11: #{_add_mean_single.1} parent=0 // pred_check_branch
    %29 = sbr.rel (0) target = $region13
  $region12: #{_add_mean_single.1} parent=0 // pred_region
    _
  $region13: #{_add_mean_single.1} parent=0 // pred_fallthru
    _

</llo_original>
